<compile_context>
chip_gen: v7x
topology: tpu7x:2x2x1
jax: 0.10.0
libtpu: 0.0.40
codegen_flags: <defaults>
</compile_context>

<pallas_src>
import jax
import jax.numpy as jnp
from jax.experimental import pallas as pl
from jax.experimental.pallas import tpu as pltpu

HIDDEN = 32    # hidden_size
INPUT = 1      # input_size
SUBLANES = 8   # f32 sublane group


def _make_rnn_kernel(T, BP, H):
    """Build a single-invocation kernel specialized for (T, padded-B, H)."""

    def rnn_kernel(x_ref, h0_ref, wih_ref, whh_ref, b_ref, wout_ref, bout_ref,
                   y_ref, hn_ref, h_all_ref):
        # x_ref     : [T*BP, 1]  time-major, batch-padded input
        # h0_ref    : [BP, H]    initial hidden state (rows >= B are zero pad)
        # wih_ref   : [1, H]     W_ih^T  (INPUT == 1)
        # whh_ref   : [H, H]     W_hh^T
        # b_ref     : [1, H]     b_ih + b_hh (fused)
        # wout_ref  : [1, H]     output Linear weight (row form)
        # bout_ref  : [1, 1]     output Linear bias (SMEM scalar)
        # y_ref     : [1, T*BP]  per-step outputs, lane-dense row
        # hn_ref    : [BP, H]    final hidden state
        # h_all_ref : [T*BP, H]  VMEM scratch slab of all hidden states

        # Hoisted input projection for ALL timesteps: INPUT == 1 so this is a
        # broadcast multiply (VPU), and it sits off the serial recurrence chain.
        z_all = x_ref[...] * wih_ref[...] + b_ref[...]              # [T*BP, H]

        whh_t = whh_ref[...]                                        # [H, H]
        h = h0_ref[...]                                             # [BP, H]

        # Fully-unrolled recurrence (T is a static Python int).  Only h stays
        # live in vregs; each step's hidden state is written to the VMEM slab
        # with an aligned 8-sublane store that overlaps the next step's MXU work.
        # TODO(synk): if a bundle dump shows the 32x32 RHS being re-pushed every
        # step, switch to pltpu.matmul_push_rhs / matmul_acc_lhs / matmul_pop to
        # keep W_hh stationary in the MXU across the T steps.
        for t in range(T):
            z_t = z_all[t * BP:(t + 1) * BP, :]                     # [BP, H]
            h = jnp.tanh(z_t + jnp.dot(h, whh_t,
                                       preferred_element_type=jnp.float32))
            h_all_ref[pl.ds(t * BP, BP), :] = h                     # off chain

        hn_ref[...] = h                                             # [BP, H]

        # Hoisted, lane-dense output projection: one [1,H] x [T*BP,H]^T matmul
        # (contract on H), y written exactly once as a [1, T*BP] row.
        h_all = h_all_ref[...]                                      # [T*BP, H]
        y = jax.lax.dot_general(
            wout_ref[...], h_all,
            dimension_numbers=(((1,), (1,)), ((), ())),
            preferred_element_type=jnp.float32)                     # [1, T*BP]
        y_ref[...] = y + bout_ref[0, 0]

    return rnn_kernel


def rnn_forward(x, h_state, params):
    """x: [B, T, 1] float32; h_state: [1, B, 32] or None.

    Returns (outs [B, T, 1], h_n [1, B, 32]) — same as the PyTorch forward.
    """
    B, T, _ = x.shape
    H = HIDDEN
    BP = ((B + SUBLANES - 1) // SUBLANES) * SUBLANES   # pad batch to 8 sublanes

    if h_state is None:
        h0 = jnp.zeros((B, H), jnp.float32)
    else:
        h0 = h_state.reshape(B, H).astype(jnp.float32)
    h0p = jnp.zeros((BP, H), jnp.float32).at[:B].set(h0)

    # Time-major, batch-padded flatten: row t*BP + b  <->  (time t, batch b).
    x_tm = jnp.transpose(x, (1, 0, 2)).astype(jnp.float32)          # [T, B, 1]
    x_pad = jnp.zeros((T, BP, INPUT), jnp.float32).at[:, :B].set(x_tm)
    x_flat = x_pad.reshape(T * BP, INPUT)                           # [T*BP, 1]

    wih_row = params["w_ih"].T.astype(jnp.float32)                  # [1, H]
    whh_t = params["w_hh"].T.astype(jnp.float32)                    # [H, H]
    b = (params["b_ih"] + params["b_hh"]).reshape(1, H).astype(jnp.float32)
    wout_row = params["w_out"].reshape(1, H).astype(jnp.float32)    # [1, H]
    bout = params["b_out"].reshape(1, 1).astype(jnp.float32)        # [1, 1]

    vmem = pl.BlockSpec(memory_space=pltpu.MemorySpace.VMEM)
    smem = pl.BlockSpec(memory_space=pltpu.MemorySpace.SMEM)

    # Single invocation (grid=()), everything resident in VMEM: total footprint
    # is <10 KB, far under VMEM on v5e/v6e/v7x, so no grid / BlockSpec tiling.
    y_row, hn_pad = pl.pallas_call(
        _make_rnn_kernel(T, BP, H),
        out_shape=(jax.ShapeDtypeStruct((1, T * BP), jnp.float32),
                   jax.ShapeDtypeStruct((BP, H), jnp.float32)),
        in_specs=[vmem, vmem, vmem, vmem, vmem, vmem, smem],
        out_specs=(vmem, vmem),
        scratch_shapes=[pltpu.VMEM((T * BP, H), jnp.float32)],
    )(x_flat, h0p, wih_row, whh_t, b, wout_row, bout)

    outs = jnp.transpose(y_row.reshape(T, BP)[:, :B])[:, :, None]   # [B, T, 1]
    h_n = hn_pad[:B].reshape(1, B, H)
    return outs, h_n


def rnn_reference(x, h_state, params):
    """Pure-JAX reference (lax.scan) matching nn.RNN + per-step Linear."""
    B = x.shape[0]
    h0 = (jnp.zeros((B, HIDDEN), jnp.float32) if h_state is None
          else h_state.reshape(B, HIDDEN))
    hi = jax.lax.Precision.HIGHEST

    def step(h, xt):
        h_new = jnp.tanh(xt @ params["w_ih"].T + params["b_ih"]
                         + jnp.dot(h, params["w_hh"].T, precision=hi)
                         + params["b_hh"])
        y = jnp.dot(h_new, params["w_out"].T, precision=hi) + params["b_out"]
        return h_new, y

    h_last, ys = jax.lax.scan(step, h0, jnp.transpose(x, (1, 0, 2)))
    return jnp.transpose(ys, (1, 0, 2)), h_last[None]


def init_params(key):
    """Deterministic init; shapes follow nn.RNN / nn.Linear conventions."""
    k_rnn = 1.0 / jnp.sqrt(jnp.float32(HIDDEN))
    k_lin = 1.0 / jnp.sqrt(jnp.float32(HIDDEN))
    keys = jax.random.split(key, 6)
    uni = lambda k, shape, bound: jax.random.uniform(
        k, shape, jnp.float32, minval=-bound, maxval=bound)
    return {
        "w_ih": uni(keys[0], (HIDDEN, INPUT), k_rnn),    # weight_ih_l0
        "w_hh": uni(keys[1], (HIDDEN, HIDDEN), k_rnn),   # weight_hh_l0
        "b_ih": uni(keys[2], (HIDDEN,), k_rnn),          # bias_ih_l0
        "b_hh": uni(keys[3], (HIDDEN,), k_rnn),          # bias_hh_l0
        "w_out": uni(keys[4], (1, HIDDEN), k_lin),       # Linear weight
        "b_out": uni(keys[5], (1,), k_lin),              # Linear bias
    }


if __name__ == "__main__":
    key = jax.random.PRNGKey(0)
    k_params, k_x = jax.random.split(key)

    params = init_params(k_params)

    B, T = 4, 10                                      # Config.time_step = 10
    x = jax.random.normal(k_x, (B, T, INPUT), jnp.float32)
    h_state = None                                    # as in the training loop

    outs, h_n = jax.block_until_ready(rnn_forward(x, h_state, params))
    ref_outs, ref_h = rnn_reference(x, h_state, params)

    assert outs.shape == (B, T, 1) and h_n.shape == (1, B, HIDDEN)
    assert jnp.allclose(outs, ref_outs, atol=1e-4, rtol=1e-4)
    assert jnp.allclose(h_n, ref_h, atol=1e-4, rtol=1e-4)

    # Also check continuing from a non-trivial hidden state (second forward call).
    outs2, h_n2 = jax.block_until_ready(rnn_forward(x, h_n, params))
    ref_outs2, ref_h2 = rnn_reference(x, ref_h, params)
    assert jnp.allclose(outs2, ref_outs2, atol=1e-4, rtol=1e-4)
    assert jnp.allclose(h_n2, ref_h2, atol=1e-4, rtol=1e-4)

    print("KERNEL_OK")
</pallas_src>

<mosaic_0001>
module attributes {stable_mosaic.version = 11 : i64} {
  func.func @rnn_kernel(%arg0: memref<80x1xf32, #tpu.memory_space<vmem>>, %arg1: memref<8x32xf32, #tpu.memory_space<vmem>>, %arg2: memref<1x32xf32, #tpu.memory_space<vmem>>, %arg3: memref<32x32xf32, #tpu.memory_space<vmem>>, %arg4: memref<1x32xf32, #tpu.memory_space<vmem>>, %arg5: memref<1x32xf32, #tpu.memory_space<vmem>>, %arg6: memref<1x1xf32, #tpu.memory_space<smem>>, %arg7: memref<1x80xf32, #tpu.memory_space<vmem>>, %arg8: memref<8x32xf32, #tpu.memory_space<vmem>>, %arg9: memref<80x32xf32, #tpu.memory_space<vmem>>) attributes {dimension_semantics = [], scalar_prefetch = 0 : i64, scratch_operands = 1 : i64, tpu.core_type = #tpu.core_type<tc>} {
    %c0 = arith.constant 0 : index
    %c0_0 = arith.constant 0 : index
    %0 = vector.load %arg0[%c0, %c0_0] : memref<80x1xf32, #tpu.memory_space<vmem>>, vector<80x1xf32>
    %c0_1 = arith.constant 0 : index
    %c0_2 = arith.constant 0 : index
    %1 = vector.load %arg2[%c0_1, %c0_2] : memref<1x32xf32, #tpu.memory_space<vmem>>, vector<1x32xf32>
    %2 = vector.broadcast %0 : vector<80x1xf32> to vector<80x32xf32>
    %3 = vector.broadcast %1 : vector<1x32xf32> to vector<80x32xf32>
    %4 = arith.mulf %2, %3 : vector<80x32xf32>
    %c0_3 = arith.constant 0 : index
    %c0_4 = arith.constant 0 : index
    %5 = vector.load %arg4[%c0_3, %c0_4] : memref<1x32xf32, #tpu.memory_space<vmem>>, vector<1x32xf32>
    %6 = vector.broadcast %5 : vector<1x32xf32> to vector<80x32xf32>
    %7 = arith.addf %4, %6 : vector<80x32xf32>
    %c0_5 = arith.constant 0 : index
    %c0_6 = arith.constant 0 : index
    %8 = vector.load %arg3[%c0_5, %c0_6] : memref<32x32xf32, #tpu.memory_space<vmem>>, vector<32x32xf32>
    %c0_7 = arith.constant 0 : index
    %c0_8 = arith.constant 0 : index
    %9 = vector.load %arg1[%c0_7, %c0_8] : memref<8x32xf32, #tpu.memory_space<vmem>>, vector<8x32xf32>
    %10 = vector.extract_strided_slice %7 {offsets = [0, 0], sizes = [8, 32], strides = [1, 1]} : vector<80x32xf32> to vector<8x32xf32>
    %cst = arith.constant dense<0.000000e+00> : vector<8x32xf32>
    %11 = tpu.matmul %9, %8, %cst {dimension_numbers = #tpu.dot_dimension_numbers<[1], [0], [0], [1], [0, 0, 1, 1], [], []>} : vector<8x32xf32>, vector<32x32xf32>, vector<8x32xf32> -> vector<8x32xf32>
    %12 = arith.addf %10, %11 : vector<8x32xf32>
    %13 = math.tanh %12 : vector<8x32xf32>
    %c0_9 = arith.constant 0 : index
    %c0_10 = arith.constant 0 : index
    %14 = vector.load %arg9[%c0_9, %c0_10] : memref<80x32xf32, #tpu.memory_space<vmem>>, vector<8x32xf32>
    tpu.vector_store %arg9[%c0_9, %c0_10], %13 {strides = array<i32>} : memref<80x32xf32, #tpu.memory_space<vmem>>, vector<8x32xf32>,
    %15 = vector.extract_strided_slice %7 {offsets = [8, 0], sizes = [8, 32], strides = [1, 1]} : vector<80x32xf32> to vector<8x32xf32>
    %cst_11 = arith.constant dense<0.000000e+00> : vector<8x32xf32>
    %16 = tpu.matmul %13, %8, %cst_11 {dimension_numbers = #tpu.dot_dimension_numbers<[1], [0], [0], [1], [0, 0, 1, 1], [], []>} : vector<8x32xf32>, vector<32x32xf32>, vector<8x32xf32> -> vector<8x32xf32>
    %17 = arith.addf %15, %16 : vector<8x32xf32>
    %18 = math.tanh %17 : vector<8x32xf32>
    %c8 = arith.constant 8 : index
    %c0_12 = arith.constant 0 : index
    %19 = vector.load %arg9[%c8, %c0_12] : memref<80x32xf32, #tpu.memory_space<vmem>>, vector<8x32xf32>
    tpu.vector_store %arg9[%c8, %c0_12], %18 {strides = array<i32>} : memref<80x32xf32, #tpu.memory_space<vmem>>, vector<8x32xf32>,
    %20 = vector.extract_strided_slice %7 {offsets = [16, 0], sizes = [8, 32], strides = [1, 1]} : vector<80x32xf32> to vector<8x32xf32>
    %cst_13 = arith.constant dense<0.000000e+00> : vector<8x32xf32>
    %21 = tpu.matmul %18, %8, %cst_13 {dimension_numbers = #tpu.dot_dimension_numbers<[1], [0], [0], [1], [0, 0, 1, 1], [], []>} : vector<8x32xf32>, vector<32x32xf32>, vector<8x32xf32> -> vector<8x32xf32>
    %22 = arith.addf %20, %21 : vector<8x32xf32>
    %23 = math.tanh %22 : vector<8x32xf32>
    %c16 = arith.constant 16 : index
    %c0_14 = arith.constant 0 : index
    %24 = vector.load %arg9[%c16, %c0_14] : memref<80x32xf32, #tpu.memory_space<vmem>>, vector<8x32xf32>
    tpu.vector_store %arg9[%c16, %c0_14], %23 {strides = array<i32>} : memref<80x32xf32, #tpu.memory_space<vmem>>, vector<8x32xf32>,
    %25 = vector.extract_strided_slice %7 {offsets = [24, 0], sizes = [8, 32], strides = [1, 1]} : vector<80x32xf32> to vector<8x32xf32>
    %cst_15 = arith.constant dense<0.000000e+00> : vector<8x32xf32>
    %26 = tpu.matmul %23, %8, %cst_15 {dimension_numbers = #tpu.dot_dimension_numbers<[1], [0], [0], [1], [0, 0, 1, 1], [], []>} : vector<8x32xf32>, vector<32x32xf32>, vector<8x32xf32> -> vector<8x32xf32>
    %27 = arith.addf %25, %26 : vector<8x32xf32>
    %28 = math.tanh %27 : vector<8x32xf32>
    %c24 = arith.constant 24 : index
    %c0_16 = arith.constant 0 : index
    %29 = vector.load %arg9[%c24, %c0_16] : memref<80x32xf32, #tpu.memory_space<vmem>>, vector<8x32xf32>
    tpu.vector_store %arg9[%c24, %c0_16], %28 {strides = array<i32>} : memref<80x32xf32, #tpu.memory_space<vmem>>, vector<8x32xf32>,
    %30 = vector.extract_strided_slice %7 {offsets = [32, 0], sizes = [8, 32], strides = [1, 1]} : vector<80x32xf32> to vector<8x32xf32>
    %cst_17 = arith.constant dense<0.000000e+00> : vector<8x32xf32>
    %31 = tpu.matmul %28, %8, %cst_17 {dimension_numbers = #tpu.dot_dimension_numbers<[1], [0], [0], [1], [0, 0, 1, 1], [], []>} : vector<8x32xf32>, vector<32x32xf32>, vector<8x32xf32> -> vector<8x32xf32>
    %32 = arith.addf %30, %31 : vector<8x32xf32>
    %33 = math.tanh %32 : vector<8x32xf32>
    %c32 = arith.constant 32 : index
    %c0_18 = arith.constant 0 : index
    %34 = vector.load %arg9[%c32, %c0_18] : memref<80x32xf32, #tpu.memory_space<vmem>>, vector<8x32xf32>
    tpu.vector_store %arg9[%c32, %c0_18], %33 {strides = array<i32>} : memref<80x32xf32, #tpu.memory_space<vmem>>, vector<8x32xf32>,
    %35 = vector.extract_strided_slice %7 {offsets = [40, 0], sizes = [8, 32], strides = [1, 1]} : vector<80x32xf32> to vector<8x32xf32>
    %cst_19 = arith.constant dense<0.000000e+00> : vector<8x32xf32>
    %36 = tpu.matmul %33, %8, %cst_19 {dimension_numbers = #tpu.dot_dimension_numbers<[1], [0], [0], [1], [0, 0, 1, 1], [], []>} : vector<8x32xf32>, vector<32x32xf32>, vector<8x32xf32> -> vector<8x32xf32>
    %37 = arith.addf %35, %36 : vector<8x32xf32>
    %38 = math.tanh %37 : vector<8x32xf32>
    %c40 = arith.constant 40 : index
    %c0_20 = arith.constant 0 : index
    %39 = vector.load %arg9[%c40, %c0_20] : memref<80x32xf32, #tpu.memory_space<vmem>>, vector<8x32xf32>
    tpu.vector_store %arg9[%c40, %c0_20], %38 {strides = array<i32>} : memref<80x32xf32, #tpu.memory_space<vmem>>, vector<8x32xf32>,
    %40 = vector.extract_strided_slice %7 {offsets = [48, 0], sizes = [8, 32], strides = [1, 1]} : vector<80x32xf32> to vector<8x32xf32>
    %cst_21 = arith.constant dense<0.000000e+00> : vector<8x32xf32>
    %41 = tpu.matmul %38, %8, %cst_21 {dimension_numbers = #tpu.dot_dimension_numbers<[1], [0], [0], [1], [0, 0, 1, 1], [], []>} : vector<8x32xf32>, vector<32x32xf32>, vector<8x32xf32> -> vector<8x32xf32>
    %42 = arith.addf %40, %41 : vector<8x32xf32>
    %43 = math.tanh %42 : vector<8x32xf32>
    %c48 = arith.constant 48 : index
    %c0_22 = arith.constant 0 : index
    %44 = vector.load %arg9[%c48, %c0_22] : memref<80x32xf32, #tpu.memory_space<vmem>>, vector<8x32xf32>
    tpu.vector_store %arg9[%c48, %c0_22], %43 {strides = array<i32>} : memref<80x32xf32, #tpu.memory_space<vmem>>, vector<8x32xf32>,
    %45 = vector.extract_strided_slice %7 {offsets = [56, 0], sizes = [8, 32], strides = [1, 1]} : vector<80x32xf32> to vector<8x32xf32>
    %cst_23 = arith.constant dense<0.000000e+00> : vector<8x32xf32>
    %46 = tpu.matmul %43, %8, %cst_23 {dimension_numbers = #tpu.dot_dimension_numbers<[1], [0], [0], [1], [0, 0, 1, 1], [], []>} : vector<8x32xf32>, vector<32x32xf32>, vector<8x32xf32> -> vector<8x32xf32>
    %47 = arith.addf %45, %46 : vector<8x32xf32>
    %48 = math.tanh %47 : vector<8x32xf32>
    %c56 = arith.constant 56 : index
    %c0_24 = arith.constant 0 : index
    %49 = vector.load %arg9[%c56, %c0_24] : memref<80x32xf32, #tpu.memory_space<vmem>>, vector<8x32xf32>
    tpu.vector_store %arg9[%c56, %c0_24], %48 {strides = array<i32>} : memref<80x32xf32, #tpu.memory_space<vmem>>, vector<8x32xf32>,
    %50 = vector.extract_strided_slice %7 {offsets = [64, 0], sizes = [8, 32], strides = [1, 1]} : vector<80x32xf32> to vector<8x32xf32>
    %cst_25 = arith.constant dense<0.000000e+00> : vector<8x32xf32>
    %51 = tpu.matmul %48, %8, %cst_25 {dimension_numbers = #tpu.dot_dimension_numbers<[1], [0], [0], [1], [0, 0, 1, 1], [], []>} : vector<8x32xf32>, vector<32x32xf32>, vector<8x32xf32> -> vector<8x32xf32>
    %52 = arith.addf %50, %51 : vector<8x32xf32>
    %53 = math.tanh %52 : vector<8x32xf32>
    %c64 = arith.constant 64 : index
    %c0_26 = arith.constant 0 : index
    %54 = vector.load %arg9[%c64, %c0_26] : memref<80x32xf32, #tpu.memory_space<vmem>>, vector<8x32xf32>
    tpu.vector_store %arg9[%c64, %c0_26], %53 {strides = array<i32>} : memref<80x32xf32, #tpu.memory_space<vmem>>, vector<8x32xf32>,
    %55 = vector.extract_strided_slice %7 {offsets = [72, 0], sizes = [8, 32], strides = [1, 1]} : vector<80x32xf32> to vector<8x32xf32>
    %cst_27 = arith.constant dense<0.000000e+00> : vector<8x32xf32>
    %56 = tpu.matmul %53, %8, %cst_27 {dimension_numbers = #tpu.dot_dimension_numbers<[1], [0], [0], [1], [0, 0, 1, 1], [], []>} : vector<8x32xf32>, vector<32x32xf32>, vector<8x32xf32> -> vector<8x32xf32>
    %57 = arith.addf %55, %56 : vector<8x32xf32>
    %58 = math.tanh %57 : vector<8x32xf32>
    %c72 = arith.constant 72 : index
    %c0_28 = arith.constant 0 : index
    %59 = vector.load %arg9[%c72, %c0_28] : memref<80x32xf32, #tpu.memory_space<vmem>>, vector<8x32xf32>
    tpu.vector_store %arg9[%c72, %c0_28], %58 {strides = array<i32>} : memref<80x32xf32, #tpu.memory_space<vmem>>, vector<8x32xf32>,
    %c0_29 = arith.constant 0 : index
    %c0_30 = arith.constant 0 : index
    %60 = vector.load %arg8[%c0_29, %c0_30] : memref<8x32xf32, #tpu.memory_space<vmem>>, vector<8x32xf32>
    tpu.vector_store %arg8[%c0_29, %c0_30], %58 {strides = array<i32>} : memref<8x32xf32, #tpu.memory_space<vmem>>, vector<8x32xf32>,
    %c0_31 = arith.constant 0 : index
    %c0_32 = arith.constant 0 : index
    %61 = vector.load %arg9[%c0_31, %c0_32] : memref<80x32xf32, #tpu.memory_space<vmem>>, vector<80x32xf32>
    %c0_33 = arith.constant 0 : index
    %c0_34 = arith.constant 0 : index
    %62 = vector.load %arg5[%c0_33, %c0_34] : memref<1x32xf32, #tpu.memory_space<vmem>>, vector<1x32xf32>
    %cst_35 = arith.constant dense<0.000000e+00> : vector<1x80xf32>
    %63 = tpu.matmul %62, %61, %cst_35 {dimension_numbers = #tpu.dot_dimension_numbers<[1], [1], [0], [0], [0, 0, 1, 0], [], []>} : vector<1x32xf32>, vector<80x32xf32>, vector<1x80xf32> -> vector<1x80xf32>
    %c0_36 = arith.constant 0 : index
    %c0_37 = arith.constant 0 : index
    %64 = memref.load %arg6[%c0_36, %c0_37] : memref<1x1xf32, #tpu.memory_space<smem>>
    %65 = vector.broadcast %64 : f32 to vector<1x80xf32>
    %66 = arith.addf %63, %65 : vector<1x80xf32>
    %c0_38 = arith.constant 0 : index
    %c0_39 = arith.constant 0 : index
    %67 = vector.load %arg7[%c0_38, %c0_39] : memref<1x80xf32, #tpu.memory_space<vmem>>, vector<1x80xf32>
    tpu.vector_store %arg7[%c0_38, %c0_39], %66 {strides = array<i32>} : memref<1x80xf32, #tpu.memory_space<vmem>>, vector<1x80xf32>,
    return
  }
}

</mosaic_0001>

<llo_original>
// kernel: tpu_custom_call.1
$region0: #{tpu_custom_call.1}
  #allocation0 [shape = 'u32[]', space=smem, size = 0x4, offset = 0x4, fixed_abs, tag = 'smem constant byte address 0x4 - core index']
  #allocation1 [shape = 'u32[144,128]{1,0:T(1,128)}', space=vmem, size = 0x12000, scoped, tag = 'internal scratch']
  #allocation2 [shape = 'f32[80,32]{1,0:T(8,128)}', space=vmem, size = 0xa000, scoped, tag = 'scratch operand']
  #allocation3 [shape = 'f32[1,1]{1,0:T(1,128)S(6)}', space=smem, size = 0x200, scoped, tag = 'scoped memory for tpu_custom_call.1']
  %s0 = inlined_call_operand.vmem [shape: f32[80,1], index: 0, kind: input, shape index: {}]
  %s1 = inlined_call_operand.vmem [shape: f32[8,32], index: 1, kind: input, shape index: {}]
  %s2 = inlined_call_operand.vmem [shape: f32[1,32], index: 2, kind: input, shape index: {}]
  %s3 = inlined_call_operand.vmem [shape: f32[32,32], index: 3, kind: input, shape index: {}]
  %s4 = inlined_call_operand.vmem [shape: f32[1,32], index: 4, kind: input, shape index: {}]
  %s5 = inlined_call_operand.vmem [shape: f32[1,32], index: 5, kind: input, shape index: {}]
  %s6 = inlined_call_operand.<no memory space> [shape: f32[1,1], index: 6, kind: input, shape index: {}]
  %s7 = inlined_call_operand.hbm [shape: f32[1,80], index: 7, kind: output, shape index: {0}]
  %s8 = inlined_call_operand.hbm [shape: f32[8,32], index: 8, kind: output, shape index: {1}]
  %9 = xla_tuple %s7, %s8
  %s10 = sld [smem:[#allocation0]]
  $region46: #{tpu_custom_call.1} parent=0
    _
  %s12 = ssub.s32 1, %s10
  %s13 = scalar_select 0, %s12, %s10
  %14 = sst [smem:[#allocation3]] %s6
  $region1: #{tpu_custom_call.1} parent=0
    #allocation4 [shape = 'u8[512]{0}', space=vmem, size = 0x400, scoped, tag = 'output window, operand 0, single buffered']
    #allocation5 [shape = 's32[1]{0}', space=sflag, size = 0x4, scoped, tag = 'scoped memory for tpu_custom_call.1']
    #allocation6 [shape = 'u8[4096]{0}', space=vmem, size = 0x1000, scoped, tag = 'output window, operand 1, single buffered']
    #allocation7 [shape = 's32[1]{0}', space=sflag, size = 0x4, scoped, tag = 'scoped memory for tpu_custom_call.1']
    %15 = vsyncpa [#allocation5], 0
    %16 = vsyncpa [#allocation7], 0
    // Predicated region
    $region2: #{tpu_custom_call.1} parent=1 // pred_check
      _
    $region3: #{tpu_custom_call.1} parent=1 // pred_check_branch
      %18 = sbr.rel (0) target = $region5
    $region4: #{tpu_custom_call.1} parent=1 // pred_region
      _
    $region5: #{tpu_custom_call.1} parent=1 // pred_fallthru
      _
    // Predicated region
    $region6: #{tpu_custom_call.1} parent=1 // pred_check
      _
    $region7: #{tpu_custom_call.1} parent=1 // pred_check_branch
      %20 = sbr.rel (0) target = $region9
    $region8: #{tpu_custom_call.1} parent=1 // pred_region
      _
    $region9: #{tpu_custom_call.1} parent=1 // pred_fallthru
      _
    // Predicated region
    $region10: #{tpu_custom_call.1} parent=1 // pred_check
      _
    $region11: #{tpu_custom_call.1} parent=1 // pred_check_branch
      %22 = sbr.rel (0) target = $region13
    $region12: #{tpu_custom_call.1} parent=1 // pred_region
      _
    $region13: #{tpu_custom_call.1} parent=1 // pred_fallthru
      _
    // Predicated region
    $region14: #{tpu_custom_call.1} parent=1 // pred_check
      _
    $region15: #{tpu_custom_call.1} parent=1 // pred_check_branch
      %24 = sbr.rel (0) target = $region17
    $region16: #{tpu_custom_call.1} parent=1 // pred_region
      _
    $region17: #{tpu_custom_call.1} parent=1 // pred_fallthru
      _
    // Predicated region
    $region18: #{tpu_custom_call.1} parent=1 // pred_check
      _
    $region19: #{tpu_custom_call.1} parent=1 // pred_check_branch
      %26 = sbr.rel (0) target = $region21
    $region20: #{tpu_custom_call.1} parent=1 // pred_region
      _
    $region21: #{tpu_custom_call.1} parent=1 // pred_fallthru
      _
    // Predicated region
    $region22: #{tpu_custom_call.1} parent=1 // pred_check
      _
    $region23: #{tpu_custom_call.1} parent=1 // pred_check_branch
      %28 = sbr.rel (0) target = $region25
    $region24: #{tpu_custom_call.1} parent=1 // pred_region
      _
    $region25: #{tpu_custom_call.1} parent=1 // pred_fallthru
      _
    // Predicated region
    $region26: #{tpu_custom_call.1} parent=1 // pred_check
      _
    $region27: #{tpu_custom_call.1} parent=1 // pred_check_branch
      %30 = sbr.rel (0) target = $region29
    $region28: #{tpu_custom_call.1} parent=1 // pred_region
      _
    $region29: #{tpu_custom_call.1} parent=1 // pred_fallthru
      _
    %v31 = vld [vmem:[%s0] sm:$0xff]
    %v32 = vld [vmem:[%s0 + $0x8] sm:$0xff]
    %v33 = vld [vmem:[%s0 + $0x10] sm:$0xff]
    %v34 = vld [vmem:[%s0 + $0x18] sm:$0xff]
    %v35 = vld [vmem:[%s0 + $0x20] sm:$0xff]
    %v36 = vld [vmem:[%s0 + $0x28] sm:$0xff]
    %v37 = vld [vmem:[%s0 + $0x30] sm:$0xff]
    %v38 = vld [vmem:[%s0 + $0x38] sm:$0xff]
    %v39 = vld [vmem:[%s0 + $0x40] sm:$0xff]
    %v40 = vld [vmem:[%s0 + $0x48] sm:$0xff]
    %v41 = vld [vmem:[%s2] sm:$0x1]
    %43 = vset.pattern.permute.xlu0 0
    %44 = vperm.xlu0 %43, %v31
    %v45 = vpop.permute.xlu0 %44
    %48 = vset.pattern.permute.xlu0 0
    %49 = vperm.xlu0 %48, %v32
    %v50 = vpop.permute.xlu0 %49
    %53 = vset.pattern.permute.xlu0 0
    %54 = vperm.xlu0 %53, %v33
    %v55 = vpop.permute.xlu0 %54
    %58 = vset.pattern.permute.xlu0 0
    %59 = vperm.xlu0 %58, %v34
    %v60 = vpop.permute.xlu0 %59
    %63 = vset.pattern.permute.xlu0 0
    %64 = vperm.xlu0 %63, %v35
    %v65 = vpop.permute.xlu0 %64
    %68 = vset.pattern.permute.xlu0 0
    %69 = vperm.xlu0 %68, %v36
    %v70 = vpop.permute.xlu0 %69
    %73 = vset.pattern.permute.xlu0 0
    %74 = vperm.xlu0 %73, %v37
    %v75 = vpop.permute.xlu0 %74
    %78 = vset.pattern.permute.xlu0 0
    %79 = vperm.xlu0 %78, %v38
    %v80 = vpop.permute.xlu0 %79
    %83 = vset.pattern.permute.xlu0 0
    %84 = vperm.xlu0 %83, %v39
    %v85 = vpop.permute.xlu0 %84
    %88 = vset.pattern.permute.xlu0 0
    %89 = vperm.xlu0 %88, %v40
    %v90 = vpop.permute.xlu0 %89
    %v93 = vlaneseq
    %v94 = vshrl.u32 %v93, 7
    %v95 = vsub.s32 0, %v94
    %v96 = vrot.slane %v41, %v95
    %v98 = vmul.f32 %v45, %v96
    %v99 = vmul.f32 %v50, %v96
    %v100 = vmul.f32 %v55, %v96
    %v101 = vmul.f32 %v60, %v96
    %v102 = vmul.f32 %v65, %v96
    %v103 = vmul.f32 %v70, %v96
    %v104 = vmul.f32 %v75, %v96
    %v105 = vmul.f32 %v80, %v96
    %v106 = vmul.f32 %v85, %v96
    %v107 = vmul.f32 %v90, %v96
    %v108 = vld [vmem:[%s4] sm:$0x1]
    %v110 = vlaneseq
    %v111 = vshrl.u32 %v110, 7
    %v112 = vsub.s32 0, %v111
    %v113 = vrot.slane %v108, %v112
    %v115 = vadd.f32 %v98, %v113
    %v116 = vadd.f32 %v99, %v113
    %v117 = vadd.f32 %v100, %v113
    %v118 = vadd.f32 %v101, %v113
    %v119 = vadd.f32 %v102, %v113
    %v120 = vadd.f32 %v103, %v113
    %v121 = vadd.f32 %v104, %v113
    %v122 = vadd.f32 %v105, %v113
    %v123 = vadd.f32 %v106, %v113
    %v124 = vadd.f32 %v107, %v113
    %v125 = vld [vmem:[%s3] sm:$0xff]
    %v126 = vld [vmem:[%s3 + $0x8] sm:$0xff]
    %v127 = vld [vmem:[%s3 + $0x10] sm:$0xff]
    %v128 = vld [vmem:[%s3 + $0x18] sm:$0xff]
    %v129 = vld [vmem:[%s1] sm:$0xff]
    %vm130 = vcmask 261120
    %v132 = vsel %vm130, %v129, 0
    %134 = vmatprep.subr.mxu0 0.0
    %135 = vmatpush1.msra.mxu0 %v125
    %136 = vmatprep.subr.mxu0 0.0
    %137 = vmatpush1.msra.mxu0 %v126
    %138 = vmatprep.subr.mxu0 0.0
    %139 = vmatpush1.msra.mxu0 %v127
    %140 = vmatprep.subr.mxu0 0.0
    %141 = vmatpush1.msra.mxu0 %v128
    %142 = vmatprep.subr.mxu0 0.0
    %143 = vmatpush1.msra.mxu0 0.0
    %144 = vmatprep.subr.mxu0 0.0
    %145 = vmatpush1.msra.mxu0 0.0
    %146 = vmatprep.subr.mxu0 0.0
    %147 = vmatpush1.msra.mxu0 0.0
    %148 = vmatprep.subr.mxu0 0.0
    %149 = vmatpush1.msra.mxu0 0.0
    %150 = vmatprep.subr.mxu0 0.0
    %151 = vmatpush1.msra.mxu0 0.0
    %152 = vmatprep.subr.mxu0 0.0
    %153 = vmatpush1.msra.mxu0 0.0
    %154 = vmatprep.subr.mxu0 0.0
    %155 = vmatpush1.msra.mxu0 0.0
    %156 = vmatprep.subr.mxu0 0.0
    %157 = vmatpush1.msra.mxu0 0.0
    %158 = vmatprep.subr.mxu0 0.0
    %159 = vmatpush1.msra.mxu0 0.0
    %160 = vmatprep.subr.mxu0 0.0
    %161 = vmatpush1.msra.mxu0 0.0
    %162 = vmatprep.subr.mxu0 0.0
    %163 = vmatpush1.msra.mxu0 0.0
    %164 = vmatprep.subr.mxu0 0.0
    %165 = vmatpush1.msra.mxu0 0.0
    %166 = vmatprep.subr.mxu0 0.0
    %167 = vmatpush1.msra.mxu0 0.0
    %168 = vmatprep.subr.mxu0 0.0
    %169 = vmatpush1.msra.mxu0 0.0
    %170 = vmatprep.subr.mxu0 0.0
    %171 = vmatpush1.msra.mxu0 0.0
    %172 = vmatprep.subr.mxu0 0.0
    %173 = vmatpush1.msra.mxu0 0.0
    %174 = vmatprep.subr.mxu0 0.0
    %175 = vmatpush1.msra.mxu0 0.0
    %176 = vmatprep.subr.mxu0 0.0
    %177 = vmatpush1.msra.mxu0 0.0
    %178 = vmatprep.subr.mxu0 0.0
    %179 = vmatpush1.msra.mxu0 0.0
    %180 = vmatprep.subr.mxu0 0.0
    %181 = vmatpush1.msra.mxu0 0.0
    %182 = vmatprep.subr.mxu0 0.0
    %183 = vmatpush1.msra.mxu0 0.0
    %184 = vmatprep.subr.mxu0 0.0
    %185 = vmatpush1.msra.mxu0 0.0
    %186 = vmatprep.subr.mxu0 0.0
    %187 = vmatpush1.msra.mxu0 0.0
    %188 = vmatprep.subr.mxu0 0.0
    %189 = vmatpush1.msra.mxu0 0.0
    %190 = vmatprep.subr.mxu0 0.0
    %191 = vmatpush1.msra.mxu0 0.0
    %192 = vmatprep.subr.mxu0 0.0
    %193 = vmatpush1.msra.mxu0 0.0
    %194 = vmatprep.subr.mxu0 0.0
    %195 = vmatpush1.msra.mxu0 0.0
    %196 = vmatprep.subr.mxu0 0.0
    %197 = vmatpush1.msra.mxu0 0.0
    %198 = vmatprep.mubr.f32.mxu0 0.0
    %199 = vmatmul.mubr.f32.gmra.mrb[0].mxu0 %v132
    %v200 = vpop.f32.mrb[0].mxu0
    %v201 = vadd.f32 0.0, %v200
    %v202 = vpop.f32.mrb[0].mxu0
    %203 = vdwg.mxu0
    %v204 = vadd.f32 %v115, %v201
    %v205 = vtanh.pop %v204
    %206 = vst.msk [vmem:[#allocation2] sm:$0xff] %vm130, %v205
    %v208 = vsel %vm130, %v205, 0
    %210 = vmatprep.subr.mxu0 0.0
    %211 = vmatpush1.msra.mxu0 %v125
    %212 = vmatprep.subr.mxu0 0.0
    %213 = vmatpush1.msra.mxu0 %v126
    %214 = vmatprep.subr.mxu0 0.0
    %215 = vmatpush1.msra.mxu0 %v127
    %216 = vmatprep.subr.mxu0 0.0
    %217 = vmatpush1.msra.mxu0 %v128
    %218 = vmatprep.subr.mxu0 0.0
    %219 = vmatpush1.msra.mxu0 0.0
    %220 = vmatprep.subr.mxu0 0.0
    %221 = vmatpush1.msra.mxu0 0.0
    %222 = vmatprep.subr.mxu0 0.0
    %223 = vmatpush1.msra.mxu0 0.0
    %224 = vmatprep.subr.mxu0 0.0
    %225 = vmatpush1.msra.mxu0 0.0
    %226 = vmatprep.subr.mxu0 0.0
    %227 = vmatpush1.msra.mxu0 0.0
    %228 = vmatprep.subr.mxu0 0.0
    %229 = vmatpush1.msra.mxu0 0.0
    %230 = vmatprep.subr.mxu0 0.0
    %231 = vmatpush1.msra.mxu0 0.0
    %232 = vmatprep.subr.mxu0 0.0
    %233 = vmatpush1.msra.mxu0 0.0
    %234 = vmatprep.subr.mxu0 0.0
    %235 = vmatpush1.msra.mxu0 0.0
    %236 = vmatprep.subr.mxu0 0.0
    %237 = vmatpush1.msra.mxu0 0.0
    %238 = vmatprep.subr.mxu0 0.0
    %239 = vmatpush1.msra.mxu0 0.0
    %240 = vmatprep.subr.mxu0 0.0
    %241 = vmatpush1.msra.mxu0 0.0
    %242 = vmatprep.subr.mxu0 0.0
    %243 = vmatpush1.msra.mxu0 0.0
    %244 = vmatprep.subr.mxu0 0.0
    %245 = vmatpush1.msra.mxu0 0.0
    %246 = vmatprep.subr.mxu0 0.0
    %247 = vmatpush1.msra.mxu0 0.0
    %248 = vmatprep.subr.mxu0 0.0
    %249 = vmatpush1.msra.mxu0 0.0
    %250 = vmatprep.subr.mxu0 0.0
    %251 = vmatpush1.msra.mxu0 0.0
    %252 = vmatprep.subr.mxu0 0.0
    %253 = vmatpush1.msra.mxu0 0.0
    %254 = vmatprep.subr.mxu0 0.0
    %255 = vmatpush1.msra.mxu0 0.0
    %256 = vmatprep.subr.mxu0 0.0
    %257 = vmatpush1.msra.mxu0 0.0
    %258 = vmatprep.subr.mxu0 0.0
    %259 = vmatpush1.msra.mxu0 0.0
    %260 = vmatprep.subr.mxu0 0.0
    %261 = vmatpush1.msra.mxu0 0.0
    %262 = vmatprep.subr.mxu0 0.0
    %263 = vmatpush1.msra.mxu0 0.0
    %264 = vmatprep.subr.mxu0 0.0
    %265 = vmatpush1.msra.mxu0 0.0
    %266 = vmatprep.subr.mxu0 0.0
    %267 = vmatpush1.msra.mxu0 0.0
    %268 = vmatprep.subr.mxu0 0.0
    %269 = vmatpush1.msra.mxu0 0.0
    %270 = vmatprep.subr.mxu0 0.0
    %271 = vmatpush1.msra.mxu0 0.0
    %272 = vmatprep.subr.mxu0 0.0
    %273 = vmatpush1.msra.mxu0 0.0
    %274 = vmatprep.mubr.f32.mxu0 0.0
    %275 = vmatmul.mubr.f32.gmra.mrb[0].mxu0 %v208
    %v276 = vpop.f32.mrb[0].mxu0
    %v277 = vadd.f32 0.0, %v276
    %v278 = vpop.f32.mrb[0].mxu0
    %279 = vdwg.mxu0
    %v280 = vadd.f32 %v116, %v277
    %v281 = vtanh.pop %v280
    %282 = vst.msk [vmem:[#allocation2 + $0x8] sm:$0xff] %vm130, %v281
    %v284 = vsel %vm130, %v281, 0
    %286 = vmatprep.subr.mxu0 0.0
    %287 = vmatpush1.msra.mxu0 %v125
    %288 = vmatprep.subr.mxu0 0.0
    %289 = vmatpush1.msra.mxu0 %v126
    %290 = vmatprep.subr.mxu0 0.0
    %291 = vmatpush1.msra.mxu0 %v127
    %292 = vmatprep.subr.mxu0 0.0
    %293 = vmatpush1.msra.mxu0 %v128
    %294 = vmatprep.subr.mxu0 0.0
    %295 = vmatpush1.msra.mxu0 0.0
    %296 = vmatprep.subr.mxu0 0.0
    %297 = vmatpush1.msra.mxu0 0.0
    %298 = vmatprep.subr.mxu0 0.0
    %299 = vmatpush1.msra.mxu0 0.0
    %300 = vmatprep.subr.mxu0 0.0
    %301 = vmatpush1.msra.mxu0 0.0
    %302 = vmatprep.subr.mxu0 0.0
    %303 = vmatpush1.msra.mxu0 0.0
    %304 = vmatprep.subr.mxu0 0.0
    %305 = vmatpush1.msra.mxu0 0.0
    %306 = vmatprep.subr.mxu0 0.0
    %307 = vmatpush1.msra.mxu0 0.0
    %308 = vmatprep.subr.mxu0 0.0
    %309 = vmatpush1.msra.mxu0 0.0
    %310 = vmatprep.subr.mxu0 0.0
    %311 = vmatpush1.msra.mxu0 0.0
    %312 = vmatprep.subr.mxu0 0.0
    %313 = vmatpush1.msra.mxu0 0.0
    %314 = vmatprep.subr.mxu0 0.0
    %315 = vmatpush1.msra.mxu0 0.0
    %316 = vmatprep.subr.mxu0 0.0
    %317 = vmatpush1.msra.mxu0 0.0
    %318 = vmatprep.subr.mxu0 0.0
    %319 = vmatpush1.msra.mxu0 0.0
    %320 = vmatprep.subr.mxu0 0.0
    %321 = vmatpush1.msra.mxu0 0.0
    %322 = vmatprep.subr.mxu0 0.0
    %323 = vmatpush1.msra.mxu0 0.0
    %324 = vmatprep.subr.mxu0 0.0
    %325 = vmatpush1.msra.mxu0 0.0
    %326 = vmatprep.subr.mxu0 0.0
    %327 = vmatpush1.msra.mxu0 0.0
    %328 = vmatprep.subr.mxu0 0.0
    %329 = vmatpush1.msra.mxu0 0.0
    %330 = vmatprep.subr.mxu0 0.0
    %331 = vmatpush1.msra.mxu0 0.0
    %332 = vmatprep.subr.mxu0 0.0
    %333 = vmatpush1.msra.mxu0 0.0
    %334 = vmatprep.subr.mxu0 0.0
    %335 = vmatpush1.msra.mxu0 0.0
    %336 = vmatprep.subr.mxu0 0.0
    %337 = vmatpush1.msra.mxu0 0.0
    %338 = vmatprep.subr.mxu0 0.0
    %339 = vmatpush1.msra.mxu0 0.0
    %340 = vmatprep.subr.mxu0 0.0
    %341 = vmatpush1.msra.mxu0 0.0
    %342 = vmatprep.subr.mxu0 0.0
    %343 = vmatpush1.msra.mxu0 0.0
    %344 = vmatprep.subr.mxu0 0.0
    %345 = vmatpush1.msra.mxu0 0.0
    %346 = vmatprep.subr.mxu0 0.0
    %347 = vmatpush1.msra.mxu0 0.0
    %348 = vmatprep.subr.mxu0 0.0
    %349 = vmatpush1.msra.mxu0 0.0
    %350 = vmatprep.mubr.f32.mxu0 0.0
    %351 = vmatmul.mubr.f32.gmra.mrb[0].mxu0 %v284
    %v352 = vpop.f32.mrb[0].mxu0
    %v353 = vadd.f32 0.0, %v352
    %v354 = vpop.f32.mrb[0].mxu0
    %355 = vdwg.mxu0
    %v356 = vadd.f32 %v117, %v353
    %v357 = vtanh.pop %v356
    %358 = vst.msk [vmem:[#allocation2 + $0x10] sm:$0xff] %vm130, %v357
    %v360 = vsel %vm130, %v357, 0
    %362 = vmatprep.subr.mxu0 0.0
    %363 = vmatpush1.msra.mxu0 %v125
    %364 = vmatprep.subr.mxu0 0.0
    %365 = vmatpush1.msra.mxu0 %v126
    %366 = vmatprep.subr.mxu0 0.0
    %367 = vmatpush1.msra.mxu0 %v127
    %368 = vmatprep.subr.mxu0 0.0
    %369 = vmatpush1.msra.mxu0 %v128
    %370 = vmatprep.subr.mxu0 0.0
    %371 = vmatpush1.msra.mxu0 0.0
    %372 = vmatprep.subr.mxu0 0.0
    %373 = vmatpush1.msra.mxu0 0.0
    %374 = vmatprep.subr.mxu0 0.0
    %375 = vmatpush1.msra.mxu0 0.0
    %376 = vmatprep.subr.mxu0 0.0
    %377 = vmatpush1.msra.mxu0 0.0
    %378 = vmatprep.subr.mxu0 0.0
    %379 = vmatpush1.msra.mxu0 0.0
    %380 = vmatprep.subr.mxu0 0.0
    %381 = vmatpush1.msra.mxu0 0.0
    %382 = vmatprep.subr.mxu0 0.0
    %383 = vmatpush1.msra.mxu0 0.0
    %384 = vmatprep.subr.mxu0 0.0
    %385 = vmatpush1.msra.mxu0 0.0
    %386 = vmatprep.subr.mxu0 0.0
    %387 = vmatpush1.msra.mxu0 0.0
    %388 = vmatprep.subr.mxu0 0.0
    %389 = vmatpush1.msra.mxu0 0.0
    %390 = vmatprep.subr.mxu0 0.0
    %391 = vmatpush1.msra.mxu0 0.0
    %392 = vmatprep.subr.mxu0 0.0
    %393 = vmatpush1.msra.mxu0 0.0
    %394 = vmatprep.subr.mxu0 0.0
    %395 = vmatpush1.msra.mxu0 0.0
    %396 = vmatprep.subr.mxu0 0.0
    %397 = vmatpush1.msra.mxu0 0.0
    %398 = vmatprep.subr.mxu0 0.0
    %399 = vmatpush1.msra.mxu0 0.0
    %400 = vmatprep.subr.mxu0 0.0
    %401 = vmatpush1.msra.mxu0 0.0
    %402 = vmatprep.subr.mxu0 0.0
    %403 = vmatpush1.msra.mxu0 0.0
    %404 = vmatprep.subr.mxu0 0.0
    %405 = vmatpush1.msra.mxu0 0.0
    %406 = vmatprep.subr.mxu0 0.0
    %407 = vmatpush1.msra.mxu0 0.0
    %408 = vmatprep.subr.mxu0 0.0
    %409 = vmatpush1.msra.mxu0 0.0
    %410 = vmatprep.subr.mxu0 0.0
    %411 = vmatpush1.msra.mxu0 0.0
    %412 = vmatprep.subr.mxu0 0.0
    %413 = vmatpush1.msra.mxu0 0.0
    %414 = vmatprep.subr.mxu0 0.0
    %415 = vmatpush1.msra.mxu0 0.0
    %416 = vmatprep.subr.mxu0 0.0
    %417 = vmatpush1.msra.mxu0 0.0
    %418 = vmatprep.subr.mxu0 0.0
    %419 = vmatpush1.msra.mxu0 0.0
    %420 = vmatprep.subr.mxu0 0.0
    %421 = vmatpush1.msra.mxu0 0.0
    %422 = vmatprep.subr.mxu0 0.0
    %423 = vmatpush1.msra.mxu0 0.0
    %424 = vmatprep.subr.mxu0 0.0
    %425 = vmatpush1.msra.mxu0 0.0
    %426 = vmatprep.mubr.f32.mxu0 0.0
    %427 = vmatmul.mubr.f32.gmra.mrb[0].mxu0 %v360
    %v428 = vpop.f32.mrb[0].mxu0
    %v429 = vadd.f32 0.0, %v428
    %v430 = vpop.f32.mrb[0].mxu0
    %431 = vdwg.mxu0
    %v432 = vadd.f32 %v118, %v429
    %v433 = vtanh.pop %v432
    %434 = vst.msk [vmem:[#allocation2 + $0x18] sm:$0xff] %vm130, %v433
    %v436 = vsel %vm130, %v433, 0
    %438 = vmatprep.subr.mxu0 0.0
    %439 = vmatpush1.msra.mxu0 %v125
    %440 = vmatprep.subr.mxu0 0.0
    %441 = vmatpush1.msra.mxu0 %v126
    %442 = vmatprep.subr.mxu0 0.0
    %443 = vmatpush1.msra.mxu0 %v127
    %444 = vmatprep.subr.mxu0 0.0
    %445 = vmatpush1.msra.mxu0 %v128
    %446 = vmatprep.subr.mxu0 0.0
    %447 = vmatpush1.msra.mxu0 0.0
    %448 = vmatprep.subr.mxu0 0.0
    %449 = vmatpush1.msra.mxu0 0.0
    %450 = vmatprep.subr.mxu0 0.0
    %451 = vmatpush1.msra.mxu0 0.0
    %452 = vmatprep.subr.mxu0 0.0
    %453 = vmatpush1.msra.mxu0 0.0
    %454 = vmatprep.subr.mxu0 0.0
    %455 = vmatpush1.msra.mxu0 0.0
    %456 = vmatprep.subr.mxu0 0.0
    %457 = vmatpush1.msra.mxu0 0.0
    %458 = vmatprep.subr.mxu0 0.0
    %459 = vmatpush1.msra.mxu0 0.0
    %460 = vmatprep.subr.mxu0 0.0
    %461 = vmatpush1.msra.mxu0 0.0
    %462 = vmatprep.subr.mxu0 0.0
    %463 = vmatpush1.msra.mxu0 0.0
    %464 = vmatprep.subr.mxu0 0.0
    %465 = vmatpush1.msra.mxu0 0.0
    %466 = vmatprep.subr.mxu0 0.0
    %467 = vmatpush1.msra.mxu0 0.0
    %468 = vmatprep.subr.mxu0 0.0
    %469 = vmatpush1.msra.mxu0 0.0
    %470 = vmatprep.subr.mxu0 0.0
    %471 = vmatpush1.msra.mxu0 0.0
    %472 = vmatprep.subr.mxu0 0.0
    %473 = vmatpush1.msra.mxu0 0.0
    %474 = vmatprep.subr.mxu0 0.0
    %475 = vmatpush1.msra.mxu0 0.0
    %476 = vmatprep.subr.mxu0 0.0
    %477 = vmatpush1.msra.mxu0 0.0
    %478 = vmatprep.subr.mxu0 0.0
    %479 = vmatpush1.msra.mxu0 0.0
    %480 = vmatprep.subr.mxu0 0.0
    %481 = vmatpush1.msra.mxu0 0.0
    %482 = vmatprep.subr.mxu0 0.0
    %483 = vmatpush1.msra.mxu0 0.0
    %484 = vmatprep.subr.mxu0 0.0
    %485 = vmatpush1.msra.mxu0 0.0
    %486 = vmatprep.subr.mxu0 0.0
    %487 = vmatpush1.msra.mxu0 0.0
    %488 = vmatprep.subr.mxu0 0.0
    %489 = vmatpush1.msra.mxu0 0.0
    %490 = vmatprep.subr.mxu0 0.0
    %491 = vmatpush1.msra.mxu0 0.0
    %492 = vmatprep.subr.mxu0 0.0
    %493 = vmatpush1.msra.mxu0 0.0
    %494 = vmatprep.subr.mxu0 0.0
    %495 = vmatpush1.msra.mxu0 0.0
    %496 = vmatprep.subr.mxu0 0.0
    %497 = vmatpush1.msra.mxu0 0.0
    %498 = vmatprep.subr.mxu0 0.0
    %499 = vmatpush1.msra.mxu0 0.0
    %500 = vmatprep.subr.mxu0 0.0
    %501 = vmatpush1.msra.mxu0 0.0
    %502 = vmatprep.mubr.f32.mxu0 0.0
    %503 = vmatmul.mubr.f32.gmra.mrb[0].mxu0 %v436
    %v504 = vpop.f32.mrb[0].mxu0
    %v505 = vadd.f32 0.0, %v504
    %v506 = vpop.f32.mrb[0].mxu0
    %507 = vdwg.mxu0
    %v508 = vadd.f32 %v119, %v505
    %v509 = vtanh.pop %v508
    %510 = vst.msk [vmem:[#allocation2 + $0x20] sm:$0xff] %vm130, %v509
    %v512 = vsel %vm130, %v509, 0
    %514 = vmatprep.subr.mxu0 0.0
    %515 = vmatpush1.msra.mxu0 %v125
    %516 = vmatprep.subr.mxu0 0.0
    %517 = vmatpush1.msra.mxu0 %v126
    %518 = vmatprep.subr.mxu0 0.0
    %519 = vmatpush1.msra.mxu0 %v127
    %520 = vmatprep.subr.mxu0 0.0
    %521 = vmatpush1.msra.mxu0 %v128
    %522 = vmatprep.subr.mxu0 0.0
    %523 = vmatpush1.msra.mxu0 0.0
    %524 = vmatprep.subr.mxu0 0.0
    %525 = vmatpush1.msra.mxu0 0.0
    %526 = vmatprep.subr.mxu0 0.0
    %527 = vmatpush1.msra.mxu0 0.0
    %528 = vmatprep.subr.mxu0 0.0
    %529 = vmatpush1.msra.mxu0 0.0
    %530 = vmatprep.subr.mxu0 0.0
    %531 = vmatpush1.msra.mxu0 0.0
    %532 = vmatprep.subr.mxu0 0.0
    %533 = vmatpush1.msra.mxu0 0.0
    %534 = vmatprep.subr.mxu0 0.0
    %535 = vmatpush1.msra.mxu0 0.0
    %536 = vmatprep.subr.mxu0 0.0
    %537 = vmatpush1.msra.mxu0 0.0
    %538 = vmatprep.subr.mxu0 0.0
    %539 = vmatpush1.msra.mxu0 0.0
    %540 = vmatprep.subr.mxu0 0.0
    %541 = vmatpush1.msra.mxu0 0.0
    %542 = vmatprep.subr.mxu0 0.0
    %543 = vmatpush1.msra.mxu0 0.0
    %544 = vmatprep.subr.mxu0 0.0
    %545 = vmatpush1.msra.mxu0 0.0
    %546 = vmatprep.subr.mxu0 0.0
    %547 = vmatpush1.msra.mxu0 0.0
    %548 = vmatprep.subr.mxu0 0.0
    %549 = vmatpush1.msra.mxu0 0.0
    %550 = vmatprep.subr.mxu0 0.0
    %551 = vmatpush1.msra.mxu0 0.0
    %552 = vmatprep.subr.mxu0 0.0
    %553 = vmatpush1.msra.mxu0 0.0
    %554 = vmatprep.subr.mxu0 0.0
    %555 = vmatpush1.msra.mxu0 0.0
    %556 = vmatprep.subr.mxu0 0.0
    %557 = vmatpush1.msra.mxu0 0.0
    %558 = vmatprep.subr.mxu0 0.0
    %559 = vmatpush1.msra.mxu0 0.0
    %560 = vmatprep.subr.mxu0 0.0
    %561 = vmatpush1.msra.mxu0 0.0
    %562 = vmatprep.subr.mxu0 0.0
    %563 = vmatpush1.msra.mxu0 0.0
    %564 = vmatprep.subr.mxu0 0.0
    %565 = vmatpush1.msra.mxu0 0.0
    %566 = vmatprep.subr.mxu0 0.0
    %567 = vmatpush1.msra.mxu0 0.0
    %568 = vmatprep.subr.mxu0 0.0
    %569 = vmatpush1.msra.mxu0 0.0
    %570 = vmatprep.subr.mxu0 0.0
    %571 = vmatpush1.msra.mxu0 0.0
    %572 = vmatprep.subr.mxu0 0.0
    %573 = vmatpush1.msra.mxu0 0.0
    %574 = vmatprep.subr.mxu0 0.0
    %575 = vmatpush1.msra.mxu0 0.0
    %576 = vmatprep.subr.mxu0 0.0
    %577 = vmatpush1.msra.mxu0 0.0
    %578 = vmatprep.mubr.f32.mxu0 0.0
    %579 = vmatmul.mubr.f32.gmra.mrb[0].mxu0 %v512
    %v580 = vpop.f32.mrb[0].mxu0
    %v581 = vadd.f32 0.0, %v580
    %v582 = vpop.f32.mrb[0].mxu0
    %583 = vdwg.mxu0
    %v584 = vadd.f32 %v120, %v581
    %v585 = vtanh.pop %v584
    %586 = vst.msk [vmem:[#allocation2 + $0x28] sm:$0xff] %vm130, %v585
    %v588 = vsel %vm130, %v585, 0
    %590 = vmatprep.subr.mxu0 0.0
    %591 = vmatpush1.msra.mxu0 %v125
    %592 = vmatprep.subr.mxu0 0.0
    %593 = vmatpush1.msra.mxu0 %v126
    %594 = vmatprep.subr.mxu0 0.0
    %595 = vmatpush1.msra.mxu0 %v127
    %596 = vmatprep.subr.mxu0 0.0
    %597 = vmatpush1.msra.mxu0 %v128
    %598 = vmatprep.subr.mxu0 0.0
    %599 = vmatpush1.msra.mxu0 0.0
    %600 = vmatprep.subr.mxu0 0.0
    %601 = vmatpush1.msra.mxu0 0.0
    %602 = vmatprep.subr.mxu0 0.0
    %603 = vmatpush1.msra.mxu0 0.0
    %604 = vmatprep.subr.mxu0 0.0
    %605 = vmatpush1.msra.mxu0 0.0
    %606 = vmatprep.subr.mxu0 0.0
    %607 = vmatpush1.msra.mxu0 0.0
    %608 = vmatprep.subr.mxu0 0.0
    %609 = vmatpush1.msra.mxu0 0.0
    %610 = vmatprep.subr.mxu0 0.0
    %611 = vmatpush1.msra.mxu0 0.0
    %612 = vmatprep.subr.mxu0 0.0
    %613 = vmatpush1.msra.mxu0 0.0
    %614 = vmatprep.subr.mxu0 0.0
    %615 = vmatpush1.msra.mxu0 0.0
    %616 = vmatprep.subr.mxu0 0.0
    %617 = vmatpush1.msra.mxu0 0.0
    %618 = vmatprep.subr.mxu0 0.0
    %619 = vmatpush1.msra.mxu0 0.0
    %620 = vmatprep.subr.mxu0 0.0
    %621 = vmatpush1.msra.mxu0 0.0
    %622 = vmatprep.subr.mxu0 0.0
    %623 = vmatpush1.msra.mxu0 0.0
    %624 = vmatprep.subr.mxu0 0.0
    %625 = vmatpush1.msra.mxu0 0.0
    %626 = vmatprep.subr.mxu0 0.0
    %627 = vmatpush1.msra.mxu0 0.0
    %628 = vmatprep.subr.mxu0 0.0
    %629 = vmatpush1.msra.mxu0 0.0
    %630 = vmatprep.subr.mxu0 0.0
    %631 = vmatpush1.msra.mxu0 0.0
    %632 = vmatprep.subr.mxu0 0.0
    %633 = vmatpush1.msra.mxu0 0.0
    %634 = vmatprep.subr.mxu0 0.0
    %635 = vmatpush1.msra.mxu0 0.0
    %636 = vmatprep.subr.mxu0 0.0
    %637 = vmatpush1.msra.mxu0 0.0
    %638 = vmatprep.subr.mxu0 0.0
    %639 = vmatpush1.msra.mxu0 0.0
    %640 = vmatprep.subr.mxu0 0.0
    %641 = vmatpush1.msra.mxu0 0.0
    %642 = vmatprep.subr.mxu0 0.0
    %643 = vmatpush1.msra.mxu0 0.0
    %644 = vmatprep.subr.mxu0 0.0
    %645 = vmatpush1.msra.mxu0 0.0
    %646 = vmatprep.subr.mxu0 0.0
    %647 = vmatpush1.msra.mxu0 0.0
    %648 = vmatprep.subr.mxu0 0.0
    %649 = vmatpush1.msra.mxu0 0.0
    %650 = vmatprep.subr.mxu0 0.0
    %651 = vmatpush1.msra.mxu0 0.0
    %652 = vmatprep.subr.mxu0 0.0
    %653 = vmatpush1.msra.mxu0 0.0
    %654 = vmatprep.mubr.f32.mxu0 0.0
    %655 = vmatmul.mubr.f32.gmra.mrb[0].mxu0 %v588
    %v656 = vpop.f32.mrb[0].mxu0
    %v657 = vadd.f32 0.0, %v656
    %v658 = vpop.f32.mrb[0].mxu0
    %659 = vdwg.mxu0
    %v660 = vadd.f32 %v121, %v657
    %v661 = vtanh.pop %v660
    %662 = vst.msk [vmem:[#allocation2 + $0x30] sm:$0xff] %vm130, %v661
    %v664 = vsel %vm130, %v661, 0
    %666 = vmatprep.subr.mxu0 0.0
    %667 = vmatpush1.msra.mxu0 %v125
    %668 = vmatprep.subr.mxu0 0.0
    %669 = vmatpush1.msra.mxu0 %v126
    %670 = vmatprep.subr.mxu0 0.0
    %671 = vmatpush1.msra.mxu0 %v127
    %672 = vmatprep.subr.mxu0 0.0
    %673 = vmatpush1.msra.mxu0 %v128
    %674 = vmatprep.subr.mxu0 0.0
    %675 = vmatpush1.msra.mxu0 0.0
    %676 = vmatprep.subr.mxu0 0.0
    %677 = vmatpush1.msra.mxu0 0.0
    %678 = vmatprep.subr.mxu0 0.0
    %679 = vmatpush1.msra.mxu0 0.0
    %680 = vmatprep.subr.mxu0 0.0
    %681 = vmatpush1.msra.mxu0 0.0
    %682 = vmatprep.subr.mxu0 0.0
    %683 = vmatpush1.msra.mxu0 0.0
    %684 = vmatprep.subr.mxu0 0.0
    %685 = vmatpush1.msra.mxu0 0.0
    %686 = vmatprep.subr.mxu0 0.0
    %687 = vmatpush1.msra.mxu0 0.0
    %688 = vmatprep.subr.mxu0 0.0
    %689 = vmatpush1.msra.mxu0 0.0
    %690 = vmatprep.subr.mxu0 0.0
    %691 = vmatpush1.msra.mxu0 0.0
    %692 = vmatprep.subr.mxu0 0.0
    %693 = vmatpush1.msra.mxu0 0.0
    %694 = vmatprep.subr.mxu0 0.0
    %695 = vmatpush1.msra.mxu0 0.0
    %696 = vmatprep.subr.mxu0 0.0
    %697 = vmatpush1.msra.mxu0 0.0
    %698 = vmatprep.subr.mxu0 0.0
    %699 = vmatpush1.msra.mxu0 0.0
    %700 = vmatprep.subr.mxu0 0.0
    %701 = vmatpush1.msra.mxu0 0.0
    %702 = vmatprep.subr.mxu0 0.0
    %703 = vmatpush1.msra.mxu0 0.0
    %704 = vmatprep.subr.mxu0 0.0
    %705 = vmatpush1.msra.mxu0 0.0
    %706 = vmatprep.subr.mxu0 0.0
    %707 = vmatpush1.msra.mxu0 0.0
    %708 = vmatprep.subr.mxu0 0.0
    %709 = vmatpush1.msra.mxu0 0.0
    %710 = vmatprep.subr.mxu0 0.0
    %711 = vmatpush1.msra.mxu0 0.0
    %712 = vmatprep.subr.mxu0 0.0
    %713 = vmatpush1.msra.mxu0 0.0
    %714 = vmatprep.subr.mxu0 0.0
    %715 = vmatpush1.msra.mxu0 0.0
    %716 = vmatprep.subr.mxu0 0.0
    %717 = vmatpush1.msra.mxu0 0.0
    %718 = vmatprep.subr.mxu0 0.0
    %719 = vmatpush1.msra.mxu0 0.0
    %720 = vmatprep.subr.mxu0 0.0
    %721 = vmatpush1.msra.mxu0 0.0
    %722 = vmatprep.subr.mxu0 0.0
    %723 = vmatpush1.msra.mxu0 0.0
    %724 = vmatprep.subr.mxu0 0.0
    %725 = vmatpush1.msra.mxu0 0.0
    %726 = vmatprep.subr.mxu0 0.0
    %727 = vmatpush1.msra.mxu0 0.0
    %728 = vmatprep.subr.mxu0 0.0
    %729 = vmatpush1.msra.mxu0 0.0
    %730 = vmatprep.mubr.f32.mxu0 0.0
    %731 = vmatmul.mubr.f32.gmra.mrb[0].mxu0 %v664
    %v732 = vpop.f32.mrb[0].mxu0
    %v733 = vadd.f32 0.0, %v732
    %v734 = vpop.f32.mrb[0].mxu0
    %735 = vdwg.mxu0
    %v736 = vadd.f32 %v122, %v733
    %v737 = vtanh.pop %v736
    %738 = vst.msk [vmem:[#allocation2 + $0x38] sm:$0xff] %vm130, %v737
    %v740 = vsel %vm130, %v737, 0
    %742 = vmatprep.subr.mxu0 0.0
    %743 = vmatpush1.msra.mxu0 %v125
    %744 = vmatprep.subr.mxu0 0.0
    %745 = vmatpush1.msra.mxu0 %v126
    %746 = vmatprep.subr.mxu0 0.0
    %747 = vmatpush1.msra.mxu0 %v127
    %748 = vmatprep.subr.mxu0 0.0
    %749 = vmatpush1.msra.mxu0 %v128
    %750 = vmatprep.subr.mxu0 0.0
    %751 = vmatpush1.msra.mxu0 0.0
    %752 = vmatprep.subr.mxu0 0.0
    %753 = vmatpush1.msra.mxu0 0.0
    %754 = vmatprep.subr.mxu0 0.0
    %755 = vmatpush1.msra.mxu0 0.0
    %756 = vmatprep.subr.mxu0 0.0
    %757 = vmatpush1.msra.mxu0 0.0
    %758 = vmatprep.subr.mxu0 0.0
    %759 = vmatpush1.msra.mxu0 0.0
    %760 = vmatprep.subr.mxu0 0.0
    %761 = vmatpush1.msra.mxu0 0.0
    %762 = vmatprep.subr.mxu0 0.0
    %763 = vmatpush1.msra.mxu0 0.0
    %764 = vmatprep.subr.mxu0 0.0
    %765 = vmatpush1.msra.mxu0 0.0
    %766 = vmatprep.subr.mxu0 0.0
    %767 = vmatpush1.msra.mxu0 0.0
    %768 = vmatprep.subr.mxu0 0.0
    %769 = vmatpush1.msra.mxu0 0.0
    %770 = vmatprep.subr.mxu0 0.0
    %771 = vmatpush1.msra.mxu0 0.0
    %772 = vmatprep.subr.mxu0 0.0
    %773 = vmatpush1.msra.mxu0 0.0
    %774 = vmatprep.subr.mxu0 0.0
    %775 = vmatpush1.msra.mxu0 0.0
    %776 = vmatprep.subr.mxu0 0.0
    %777 = vmatpush1.msra.mxu0 0.0
    %778 = vmatprep.subr.mxu0 0.0
    %779 = vmatpush1.msra.mxu0 0.0
    %780 = vmatprep.subr.mxu0 0.0
    %781 = vmatpush1.msra.mxu0 0.0
    %782 = vmatprep.subr.mxu0 0.0
    %783 = vmatpush1.msra.mxu0 0.0
    %784 = vmatprep.subr.mxu0 0.0
    %785 = vmatpush1.msra.mxu0 0.0
    %786 = vmatprep.subr.mxu0 0.0
    %787 = vmatpush1.msra.mxu0 0.0
    %788 = vmatprep.subr.mxu0 0.0
    %789 = vmatpush1.msra.mxu0 0.0
    %790 = vmatprep.subr.mxu0 0.0
    %791 = vmatpush1.msra.mxu0 0.0
    %792 = vmatprep.subr.mxu0 0.0
    %793 = vmatpush1.msra.mxu0 0.0
    %794 = vmatprep.subr.mxu0 0.0
    %795 = vmatpush1.msra.mxu0 0.0
    %796 = vmatprep.subr.mxu0 0.0
    %797 = vmatpush1.msra.mxu0 0.0
    %798 = vmatprep.subr.mxu0 0.0
    %799 = vmatpush1.msra.mxu0 0.0
    %800 = vmatprep.subr.mxu0 0.0
    %801 = vmatpush1.msra.mxu0 0.0
    %802 = vmatprep.subr.mxu0 0.0
    %803 = vmatpush1.msra.mxu0 0.0
    %804 = vmatprep.subr.mxu0 0.0
    %805 = vmatpush1.msra.mxu0 0.0
    %806 = vmatprep.mubr.f32.mxu0 0.0
    %807 = vmatmul.mubr.f32.gmra.mrb[0].mxu0 %v740
    %v808 = vpop.f32.mrb[0].mxu0
    %v809 = vadd.f32 0.0, %v808
    %v810 = vpop.f32.mrb[0].mxu0
    %811 = vdwg.mxu0
    %v812 = vadd.f32 %v123, %v809
    %v813 = vtanh.pop %v812
    %814 = vst.msk [vmem:[#allocation2 + $0x40] sm:$0xff] %vm130, %v813
    %v816 = vsel %vm130, %v813, 0
    %818 = vmatprep.subr.mxu0 0.0
    %819 = vmatpush1.msra.mxu0 %v125
    %820 = vmatprep.subr.mxu0 0.0
    %821 = vmatpush1.msra.mxu0 %v126
    %822 = vmatprep.subr.mxu0 0.0
    %823 = vmatpush1.msra.mxu0 %v127
    %824 = vmatprep.subr.mxu0 0.0
    %825 = vmatpush1.msra.mxu0 %v128
    %826 = vmatprep.subr.mxu0 0.0
    %827 = vmatpush1.msra.mxu0 0.0
    %828 = vmatprep.subr.mxu0 0.0
    %829 = vmatpush1.msra.mxu0 0.0
    %830 = vmatprep.subr.mxu0 0.0
    %831 = vmatpush1.msra.mxu0 0.0
    %832 = vmatprep.subr.mxu0 0.0
    %833 = vmatpush1.msra.mxu0 0.0
    %834 = vmatprep.subr.mxu0 0.0
    %835 = vmatpush1.msra.mxu0 0.0
    %836 = vmatprep.subr.mxu0 0.0
    %837 = vmatpush1.msra.mxu0 0.0
    %838 = vmatprep.subr.mxu0 0.0
    %839 = vmatpush1.msra.mxu0 0.0
    %840 = vmatprep.subr.mxu0 0.0
    %841 = vmatpush1.msra.mxu0 0.0
    %842 = vmatprep.subr.mxu0 0.0
    %843 = vmatpush1.msra.mxu0 0.0
    %844 = vmatprep.subr.mxu0 0.0
    %845 = vmatpush1.msra.mxu0 0.0
    %846 = vmatprep.subr.mxu0 0.0
    %847 = vmatpush1.msra.mxu0 0.0
    %848 = vmatprep.subr.mxu0 0.0
    %849 = vmatpush1.msra.mxu0 0.0
    %850 = vmatprep.subr.mxu0 0.0
    %851 = vmatpush1.msra.mxu0 0.0
    %852 = vmatprep.subr.mxu0 0.0
    %853 = vmatpush1.msra.mxu0 0.0
    %854 = vmatprep.subr.mxu0 0.0
    %855 = vmatpush1.msra.mxu0 0.0
    %856 = vmatprep.subr.mxu0 0.0
    %857 = vmatpush1.msra.mxu0 0.0
    %858 = vmatprep.subr.mxu0 0.0
    %859 = vmatpush1.msra.mxu0 0.0
    %860 = vmatprep.subr.mxu0 0.0
    %861 = vmatpush1.msra.mxu0 0.0
    %862 = vmatprep.subr.mxu0 0.0
    %863 = vmatpush1.msra.mxu0 0.0
    %864 = vmatprep.subr.mxu0 0.0
    %865 = vmatpush1.msra.mxu0 0.0
    %866 = vmatprep.subr.mxu0 0.0
    %867 = vmatpush1.msra.mxu0 0.0
    %868 = vmatprep.subr.mxu0 0.0
    %869 = vmatpush1.msra.mxu0 0.0
    %870 = vmatprep.subr.mxu0 0.0
    %871 = vmatpush1.msra.mxu0 0.0
    %872 = vmatprep.subr.mxu0 0.0
    %873 = vmatpush1.msra.mxu0 0.0
    %874 = vmatprep.subr.mxu0 0.0
    %875 = vmatpush1.msra.mxu0 0.0
    %876 = vmatprep.subr.mxu0 0.0
    %877 = vmatpush1.msra.mxu0 0.0
    %878 = vmatprep.subr.mxu0 0.0
    %879 = vmatpush1.msra.mxu0 0.0
    %880 = vmatprep.subr.mxu0 0.0
    %881 = vmatpush1.msra.mxu0 0.0
    %882 = vmatprep.mubr.f32.mxu0 0.0
    %883 = vmatmul.mubr.f32.gmra.mrb[0].mxu0 %v816
    %v884 = vpop.f32.mrb[0].mxu0
    %v885 = vadd.f32 0.0, %v884
    %v886 = vpop.f32.mrb[0].mxu0
    %887 = vdwg.mxu0
    %v888 = vadd.f32 %v124, %v885
    %v889 = vtanh.pop %v888
    %890 = vst.msk [vmem:[#allocation2 + $0x48] sm:$0xff] %vm130, %v889
    %891 = vst.msk [vmem:[#allocation6] sm:$0xff] %vm130, %v889
    %v892 = vld [vmem:[#allocation2] sm:$0xff]
    %v893 = vld [vmem:[#allocation2 + $0x8] sm:$0xff]
    %v894 = vld [vmem:[#allocation2 + $0x10] sm:$0xff]
    %v895 = vld [vmem:[#allocation2 + $0x18] sm:$0xff]
    %v896 = vld [vmem:[#allocation2 + $0x20] sm:$0xff]
    %v897 = vld [vmem:[#allocation2 + $0x28] sm:$0xff]
    %v898 = vld [vmem:[#allocation2 + $0x30] sm:$0xff]
    %v899 = vld [vmem:[#allocation2 + $0x38] sm:$0xff]
    %v900 = vld [vmem:[#allocation2 + $0x40] sm:$0xff]
    %v901 = vld [vmem:[#allocation2 + $0x48] sm:$0xff]
    %v902 = vld [vmem:[%s5] sm:$0x1]
    %s903 = sld [smem:[#allocation3]]
    %v904 = vstv %s903
    %v906 = vsel %vm130, %v902, 0
    %v909 = vsel %vm130, %v892, 0
    %v912 = vsel %vm130, %v893, 0
    %v915 = vsel %vm130, %v894, 0
    %v918 = vsel %vm130, %v895, 0
    %v921 = vsel %vm130, %v896, 0
    %v924 = vsel %vm130, %v897, 0
    %v927 = vsel %vm130, %v898, 0
    %v930 = vsel %vm130, %v899, 0
    %v933 = vsel %vm130, %v900, 0
    %v936 = vsel %vm130, %v901, 0
    %938 = vmatprep.subr.mxu0 0.0
    %939 = vmatpush1.xpose.msra.mxu0 %v909
    %940 = vmatprep.subr.mxu0 0.0
    %941 = vmatpush1.xpose.msra.mxu0 %v912
    %942 = vmatprep.subr.mxu0 0.0
    %943 = vmatpush1.xpose.msra.mxu0 %v915
    %944 = vmatprep.subr.mxu0 0.0
    %945 = vmatpush1.xpose.msra.mxu0 %v918
    %946 = vmatprep.subr.mxu0 0.0
    %947 = vmatpush1.xpose.msra.mxu0 %v921
    %948 = vmatprep.subr.mxu0 0.0
    %949 = vmatpush1.xpose.msra.mxu0 %v924
    %950 = vmatprep.subr.mxu0 0.0
    %951 = vmatpush1.xpose.msra.mxu0 %v927
    %952 = vmatprep.subr.mxu0 0.0
    %953 = vmatpush1.xpose.msra.mxu0 %v930
    %954 = vmatprep.subr.mxu0 0.0
    %955 = vmatpush1.xpose.msra.mxu0 %v933
    %956 = vmatprep.subr.mxu0 0.0
    %957 = vmatpush1.xpose.msra.mxu0 %v936
    %958 = vmatprep.subr.mxu0 0.0
    %959 = vmatpush1.xpose.msra.mxu0 0.0
    %960 = vmatprep.subr.mxu0 0.0
    %961 = vmatpush1.xpose.msra.mxu0 0.0
    %962 = vmatprep.subr.mxu0 0.0
    %963 = vmatpush1.xpose.msra.mxu0 0.0
    %964 = vmatprep.subr.mxu0 0.0
    %965 = vmatpush1.xpose.msra.mxu0 0.0
    %966 = vmatprep.subr.mxu0 0.0
    %967 = vmatpush1.xpose.msra.mxu0 0.0
    %968 = vmatprep.subr.mxu0 0.0
    %969 = vmatpush1.xpose.msra.mxu0 0.0
    %970 = vmatprep.subr.mxu0 0.0
    %971 = vmatpush1.xpose.msra.mxu0 0.0
    %972 = vmatprep.subr.mxu0 0.0
    %973 = vmatpush1.xpose.msra.mxu0 0.0
    %974 = vmatprep.subr.mxu0 0.0
    %975 = vmatpush1.xpose.msra.mxu0 0.0
    %976 = vmatprep.subr.mxu0 0.0
    %977 = vmatpush1.xpose.msra.mxu0 0.0
    %978 = vmatprep.subr.mxu0 0.0
    %979 = vmatpush1.xpose.msra.mxu0 0.0
    %980 = vmatprep.subr.mxu0 0.0
    %981 = vmatpush1.xpose.msra.mxu0 0.0
    %982 = vmatprep.subr.mxu0 0.0
    %983 = vmatpush1.xpose.msra.mxu0 0.0
    %984 = vmatprep.subr.mxu0 0.0
    %985 = vmatpush1.xpose.msra.mxu0 0.0
    %986 = vmatprep.subr.mxu0 0.0
    %987 = vmatpush1.xpose.msra.mxu0 0.0
    %988 = vmatprep.subr.mxu0 0.0
    %989 = vmatpush1.xpose.msra.mxu0 0.0
    %990 = vmatprep.subr.mxu0 0.0
    %991 = vmatpush1.xpose.msra.mxu0 0.0
    %992 = vmatprep.subr.mxu0 0.0
    %993 = vmatpush1.xpose.msra.mxu0 0.0
    %994 = vmatprep.subr.mxu0 0.0
    %995 = vmatpush1.xpose.msra.mxu0 0.0
    %996 = vmatprep.subr.mxu0 0.0
    %997 = vmatpush1.xpose.msra.mxu0 0.0
    %998 = vmatprep.subr.mxu0 0.0
    %999 = vmatpush1.xpose.msra.mxu0 0.0
    %1000 = vmatprep.subr.mxu0 0.0
    %1001 = vmatpush1.xpose.msra.mxu0 0.0
    %1002 = vmatprep.mubr.f32.mxu0 0.0
    %1003 = vmatmul.mubr.f32.gmra.mrb[0].mxu0 %v906
    %v1004 = vpop.f32.mrb[0].mxu0
    %v1005 = vadd.f32 %v904, %v1004
    %v1006 = vpop.f32.mrb[0].mxu0
    %1007 = vdwg.mxu0
    %vm1008 = vcmask 647168
    %1009 = vst.msk [vmem:[#allocation4] sm:$0x1] %vm1008, %v1005
    // Predicated region
    $region30: #{tpu_custom_call.1} parent=1 // pred_check
      _
    $region31: #{tpu_custom_call.1} parent=1 // pred_check_branch
      %1011 = sbr.rel (0) target = $region33
    $region32: #{tpu_custom_call.1} parent=1 // pred_region
      %s1013 = ssub.s32 16, 16
      %1014 = vsyncadd [#allocation5], %s1013
      %s1016 = sshll.u32 [#allocation4], 4
      %s1017 = int_to_ptr.vmem [resolvable:$true] %s1016
      %1019 = dma.vmem_to_hbm [thread:$0]  %s1017, 16, %s7, [#allocation5]
    $region33: #{tpu_custom_call.1} parent=1 // pred_fallthru
      _
    // Predicated region
    $region34: #{tpu_custom_call.1} parent=1 // pred_check
      _
    $region35: #{tpu_custom_call.1} parent=1 // pred_check_branch
      %1021 = sbr.rel (0) target = $region37
    $region36: #{tpu_custom_call.1} parent=1 // pred_region
      %s1023 = ssub.s32 128, 128
      %1024 = vsyncadd [#allocation7], %s1023
      %s1026 = sshll.u32 [#allocation6], 4
      %s1027 = int_to_ptr.vmem [resolvable:$true] %s1026
      %1029 = dma.vmem_to_hbm [thread:$0]  %s1027, 128, %s8, [#allocation7]
    $region37: #{tpu_custom_call.1} parent=1 // pred_fallthru
      _
    // Predicated region
    $region38: #{tpu_custom_call.1} parent=1 // pred_check
      _
    $region39: #{tpu_custom_call.1} parent=1 // pred_check_branch
      %1031 = sbr.rel (0) target = $region41
    $region40: #{tpu_custom_call.1} parent=1 // pred_region
      %1032 = dma.done [#allocation5], 16
    $region41: #{tpu_custom_call.1} parent=1 // pred_fallthru
      _
    // Predicated region
    $region42: #{tpu_custom_call.1} parent=1 // pred_check
      _
    $region43: #{tpu_custom_call.1} parent=1 // pred_check_branch
      %1034 = sbr.rel (0) target = $region45
    $region44: #{tpu_custom_call.1} parent=1 // pred_region
      %1035 = dma.done [#allocation7], 128
    $region45: #{tpu_custom_call.1} parent=1 // pred_fallthru
      _
    %1036 = vsyncpa [#allocation5], 1
    %1037 = vsyncpa [#allocation7], 1

</llo_original>
